<compile_context>
chip_gen: v7x
topology: tpu7x:2x2x1
jax: 0.10.0
libtpu: 0.0.40
codegen_flags: <defaults>
</compile_context>

<pallas_src>
import functools

import jax
import jax.numpy as jnp
from jax.experimental import pallas as pl
from jax.experimental.pallas import tpu as pltpu

OUT_DIM = 7  # number of output channels of linear1_h / linear1_l


def _choose_tile_rows(L, b_tile, C, target_bytes=2 * 1024 * 1024):
    """Pick an L-tile (multiple of 8, ~target_bytes f32 per buffer) or full L."""
    if L <= 8:
        return L
    rows = target_bytes // max(1, b_tile * C * 4)
    rows = max(8, min(L, rows))
    rows = (rows // 8) * 8
    if rows >= L:
        return L
    return rows


def _global_predict_kernel(s_h_ref, s_l_ref, w_h_ref, w_l_ref, b_ref, o_ref,
                           acc_h_ref, acc_l_ref, *,
                           L_h, L_l, tL_h, tL_l, T_h, T_l, T_steps):
    """Streaming sum over L, tiny matmul + bias at the final grid step.

    s_h_ref: (b_tile, tL_h, C)   s_l_ref: (b_tile, tL_l, C)
    w_*_ref: (C, 7)  (already pre-scaled by 1/7)
    b_ref:   (1, 7)  (already == (L_h*b_h + L_l*b_l)/7)
    o_ref:   (b_tile, 7)
    acc_*_ref: (b_tile, C) f32 scratch accumulators.
    """
    l = pl.program_id(1)

    @pl.when(l == 0)
    def _init():
        acc_h_ref[...] = jnp.zeros_like(acc_h_ref)
        acc_l_ref[...] = jnp.zeros_like(acc_l_ref)

    # ---- partial sequence-sum of the s_h tile (VPU/XLU only; no matmul) ----
    x_h = s_h_ref[...].astype(jnp.float32)
    if (L_h % tL_h != 0) or (T_h < T_steps):
        rows_h = l * tL_h + jax.lax.broadcasted_iota(jnp.int32, (1, tL_h, 1), 1)
        x_h = jnp.where(rows_h < L_h, x_h, 0.0)
    acc_h_ref[...] += jnp.sum(x_h, axis=1)

    # ---- partial sequence-sum of the s_l tile ----
    x_l = s_l_ref[...].astype(jnp.float32)
    if (L_l % tL_l != 0) or (T_l < T_steps):
        rows_l = l * tL_l + jax.lax.broadcasted_iota(jnp.int32, (1, tL_l, 1), 1)
        x_l = jnp.where(rows_l < L_l, x_l, 0.0)
    acc_l_ref[...] += jnp.sum(x_l, axis=1)

    # ---- finalize: one tiny MXU matmul per projection + fused bias, single store ----
    @pl.when(l == T_steps - 1)
    def _finalize():
        out = (jnp.dot(acc_h_ref[...], w_h_ref[...],
                       preferred_element_type=jnp.float32)
               + jnp.dot(acc_l_ref[...], w_l_ref[...],
                         preferred_element_type=jnp.float32)
               + b_ref[...])
        o_ref[...] = out.astype(o_ref.dtype)


def global_predict(s_h, s_l, params):
    """Pallas wrapper. s_h: (B, L_h, C), s_l: (B, L_l, C) -> (B, 7)."""
    B, L_h, C = s_h.shape
    B2, L_l, C2 = s_l.shape
    assert B == B2 and C == C2, (s_h.shape, s_l.shape)

    # Fold the /7 and the L*bias terms into the weights / bias at trace time.
    inv = jnp.float32(1.0 / OUT_DIM)
    w_h = params["w_h"].astype(jnp.float32) * inv                      # (C, 7)
    w_l = params["w_l"].astype(jnp.float32) * inv                      # (C, 7)
    b = ((L_h * params["b_h"] + L_l * params["b_l"]) * inv)            # (7,)
    b = b.reshape(1, OUT_DIM).astype(jnp.float32)

    # Batch tile: full B when small, otherwise a sublane-friendly multiple of 8.
    b_tile = B if (B <= 8 or B % 8 != 0) else 8
    T_b = pl.cdiv(B, b_tile)

    # L tiles sized to ~2 MiB/buffer (safe for v7x VMEM; still big enough to
    # reach HBM roofline on v5e/v6e).
    tL_h = _choose_tile_rows(L_h, b_tile, C)
    tL_l = _choose_tile_rows(L_l, b_tile, C)
    T_h = pl.cdiv(L_h, tL_h)
    T_l = pl.cdiv(L_l, tL_l)
    T_steps = max(T_h, T_l)

    kernel = functools.partial(
        _global_predict_kernel,
        L_h=L_h, L_l=L_l, tL_h=tL_h, tL_l=tL_l,
        T_h=T_h, T_l=T_l, T_steps=T_steps)

    return pl.pallas_call(
        kernel,
        out_shape=jax.ShapeDtypeStruct((B, OUT_DIM), jnp.float32),
        grid_spec=pltpu.PrefetchScalarGridSpec(
            num_scalar_prefetch=0,
            grid=(T_b, T_steps),
            in_specs=[
                # Sequence-tiled streaming inputs (clamped index on the shorter one).
                pl.BlockSpec((b_tile, tL_h, C),
                             lambda bi, li: (bi, jnp.minimum(li, T_h - 1), 0)),
                pl.BlockSpec((b_tile, tL_l, C),
                             lambda bi, li: (bi, jnp.minimum(li, T_l - 1), 0)),
                # Weights / bias stay VMEM-resident across the whole grid.
                pl.BlockSpec((C, OUT_DIM), lambda bi, li: (0, 0)),
                pl.BlockSpec((C, OUT_DIM), lambda bi, li: (0, 0)),
                pl.BlockSpec((1, OUT_DIM), lambda bi, li: (0, 0)),
            ],
            out_specs=pl.BlockSpec((b_tile, OUT_DIM), lambda bi, li: (bi, 0)),
            scratch_shapes=[pltpu.VMEM((b_tile, C), jnp.float32),
                            pltpu.VMEM((b_tile, C), jnp.float32)],
        ),
        compiler_params=pltpu.CompilerParams(
            dimension_semantics=("parallel", "arbitrary")),
    )(s_h, s_l, w_h, w_l, b)


def init_params(key, c_s, max_len=256):
    """Deterministic init mimicking nn.Linear (uniform +/- 1/sqrt(fan_in))."""
    ks = jax.random.split(key, 6)
    bound1 = 1.0 / jnp.sqrt(jnp.float32(c_s))
    bound2 = 1.0 / jnp.sqrt(jnp.float32(max_len))
    params = {
        # stored transposed: (in, out) so kernel does x @ W
        "w_h": jax.random.uniform(ks[0], (c_s, OUT_DIM), jnp.float32, -bound1, bound1),
        "b_h": jax.random.uniform(ks[1], (OUT_DIM,), jnp.float32, -bound1, bound1),
        "w_l": jax.random.uniform(ks[2], (c_s, OUT_DIM), jnp.float32, -bound1, bound1),
        "b_l": jax.random.uniform(ks[3], (OUT_DIM,), jnp.float32, -bound1, bound1),
        # linear2 exists in __init__ but is unused in forward (kept for parity).
        "w2": jax.random.uniform(ks[4], (max_len, OUT_DIM), jnp.float32, -bound2, bound2),
        "b2": jax.random.uniform(ks[5], (OUT_DIM,), jnp.float32, -bound2, bound2),
    }
    return params


def global_predict_ref(s_h, s_l, params):
    """Pure-JAX reference (matmul-then-sum form) for correctness checking."""
    c_h = jnp.einsum("blc,cd->bld", s_h, params["w_h"]) + params["b_h"]
    c_l = jnp.einsum("blc,cd->bld", s_l, params["w_l"]) + params["b_l"]
    c = jnp.concatenate([c_h, c_l], axis=-2)
    return jnp.sum(c, axis=-2) / c.shape[-1]


if __name__ == "__main__":
    B, L_h, L_l, c_s = 2, 8, 16, 32

    key = jax.random.PRNGKey(0)
    k_sh, k_sl, k_p = jax.random.split(key, 3)

    s_h = jax.random.normal(k_sh, (B, L_h, c_s), dtype=jnp.float32)
    s_l = jax.random.normal(k_sl, (B, L_l, c_s), dtype=jnp.float32)
    params = init_params(k_p, c_s, max_len=256)

    out = global_predict(s_h, s_l, params)
    out = jax.block_until_ready(out)

    ref = global_predict_ref(s_h, s_l, params)
    assert out.shape == (B, OUT_DIM), out.shape
    assert jnp.allclose(out, ref, atol=1e-4, rtol=1e-5), (out, ref)

    print("KERNEL_OK")
</pallas_src>

<mosaic_0001>
module attributes {stable_mosaic.version = 11 : i64} {
  func.func @_global_predict_kernel(%arg0: i32, %arg1: i32, %arg2: memref<2x8x32xf32, #tpu.memory_space<vmem>>, %arg3: memref<2x16x32xf32, #tpu.memory_space<vmem>>, %arg4: memref<32x7xf32, #tpu.memory_space<vmem>>, %arg5: memref<32x7xf32, #tpu.memory_space<vmem>>, %arg6: memref<1x7xf32, #tpu.memory_space<vmem>>, %arg7: memref<2x7xf32, #tpu.memory_space<vmem>>, %arg8: memref<2x32xf32, #tpu.memory_space<vmem>>, %arg9: memref<2x32xf32, #tpu.memory_space<vmem>>) attributes {dimension_semantics = [#tpu.dimension_semantics<parallel>, #tpu.dimension_semantics<arbitrary>], iteration_bounds = array<i64: 1, 1>, scalar_prefetch = 0 : i64, scratch_operands = 2 : i64, tpu.core_type = #tpu.core_type<tc>, window_params = [{transform_indices = @transform_0, window_bounds = array<i64: 2, 8, 32>}, {transform_indices = @transform_1, window_bounds = array<i64: 2, 16, 32>}, {pipeline_mode = #tpu.pipeline_mode<synchronous>, transform_indices = @transform_2, window_bounds = array<i64: 32, 7>}, {pipeline_mode = #tpu.pipeline_mode<synchronous>, transform_indices = @transform_3, window_bounds = array<i64: 32, 7>}, {pipeline_mode = #tpu.pipeline_mode<synchronous>, transform_indices = @transform_4, window_bounds = array<i64: 1, 7>}, {transform_indices = @transform_5, window_bounds = array<i64: 2, 7>}]} {
    %c0_i32 = arith.constant 0 : i32
    %0 = arith.cmpi eq, %arg1, %c0_i32 : i32
    %1 = arith.extui %0 : i1 to i32
    %c0_i32_0 = arith.constant 0 : i32
    %2 = arith.cmpi ne, %1, %c0_i32_0 : i32
    scf.if %2 {
      %cst_17 = arith.constant 0.000000e+00 : f32
      %16 = vector.broadcast %cst_17 : f32 to vector<2x32xf32>
      %c0_18 = arith.constant 0 : index
      %c0_19 = arith.constant 0 : index
      %17 = vector.load %arg8[%c0_18, %c0_19] : memref<2x32xf32, #tpu.memory_space<vmem>>, vector<2x32xf32>
      tpu.vector_store %arg8[%c0_18, %c0_19], %16 {strides = array<i32>} : memref<2x32xf32, #tpu.memory_space<vmem>>, vector<2x32xf32>,
      %cst_20 = arith.constant 0.000000e+00 : f32
      %18 = vector.broadcast %cst_20 : f32 to vector<2x32xf32>
      %c0_21 = arith.constant 0 : index
      %c0_22 = arith.constant 0 : index
      %19 = vector.load %arg9[%c0_21, %c0_22] : memref<2x32xf32, #tpu.memory_space<vmem>>, vector<2x32xf32>
      tpu.vector_store %arg9[%c0_21, %c0_22], %18 {strides = array<i32>} : memref<2x32xf32, #tpu.memory_space<vmem>>, vector<2x32xf32>,
    } else {
    }
    %c0 = arith.constant 0 : index
    %c0_1 = arith.constant 0 : index
    %c0_2 = arith.constant 0 : index
    %3 = vector.load %arg2[%c0, %c0_1, %c0_2] : memref<2x8x32xf32, #tpu.memory_space<vmem>>, vector<2x8x32xf32>
    %c0_3 = arith.constant 0 : index
    %c0_4 = arith.constant 0 : index
    %4 = vector.load %arg8[%c0_3, %c0_4] : memref<2x32xf32, #tpu.memory_space<vmem>>, vector<2x32xf32>
    %cst = arith.constant dense<0.000000e+00> : vector<2x32xf32>
    %5 = vector.multi_reduction <add>, %3, %cst [1] : vector<2x8x32xf32> to vector<2x32xf32>
    %6 = arith.addf %4, %5 : vector<2x32xf32>
    %c0_5 = arith.constant 0 : index
    %c0_6 = arith.constant 0 : index
    %7 = vector.load %arg8[%c0_5, %c0_6] : memref<2x32xf32, #tpu.memory_space<vmem>>, vector<2x32xf32>
    tpu.vector_store %arg8[%c0_5, %c0_6], %6 {strides = array<i32>} : memref<2x32xf32, #tpu.memory_space<vmem>>, vector<2x32xf32>,
    %c0_7 = arith.constant 0 : index
    %c0_8 = arith.constant 0 : index
    %c0_9 = arith.constant 0 : index
    %8 = vector.load %arg3[%c0_7, %c0_8, %c0_9] : memref<2x16x32xf32, #tpu.memory_space<vmem>>, vector<2x16x32xf32>
    %c0_10 = arith.constant 0 : index
    %c0_11 = arith.constant 0 : index
    %9 = vector.load %arg9[%c0_10, %c0_11] : memref<2x32xf32, #tpu.memory_space<vmem>>, vector<2x32xf32>
    %cst_12 = arith.constant dense<0.000000e+00> : vector<2x32xf32>
    %10 = vector.multi_reduction <add>, %8, %cst_12 [1] : vector<2x16x32xf32> to vector<2x32xf32>
    %11 = arith.addf %9, %10 : vector<2x32xf32>
    %c0_13 = arith.constant 0 : index
    %c0_14 = arith.constant 0 : index
    %12 = vector.load %arg9[%c0_13, %c0_14] : memref<2x32xf32, #tpu.memory_space<vmem>>, vector<2x32xf32>
    tpu.vector_store %arg9[%c0_13, %c0_14], %11 {strides = array<i32>} : memref<2x32xf32, #tpu.memory_space<vmem>>, vector<2x32xf32>,
    %c0_i32_15 = arith.constant 0 : i32
    %13 = arith.cmpi eq, %arg1, %c0_i32_15 : i32
    %14 = arith.extui %13 : i1 to i32
    %c0_i32_16 = arith.constant 0 : i32
    %15 = arith.cmpi ne, %14, %c0_i32_16 : i32
    scf.if %15 {
      %c0_17 = arith.constant 0 : index
      %c0_18 = arith.constant 0 : index
      %16 = vector.load %arg8[%c0_17, %c0_18] : memref<2x32xf32, #tpu.memory_space<vmem>>, vector<2x32xf32>
      %c0_19 = arith.constant 0 : index
      %c0_20 = arith.constant 0 : index
      %17 = vector.load %arg4[%c0_19, %c0_20] : memref<32x7xf32, #tpu.memory_space<vmem>>, vector<32x7xf32>
      %cst_21 = arith.constant dense<0.000000e+00> : vector<2x7xf32>
      %18 = tpu.matmul %16, %17, %cst_21 {dimension_numbers = #tpu.dot_dimension_numbers<[1], [0], [0], [1], [0, 0, 1, 1], [], []>} : vector<2x32xf32>, vector<32x7xf32>, vector<2x7xf32> -> vector<2x7xf32>
      %c0_22 = arith.constant 0 : index
      %c0_23 = arith.constant 0 : index
      %19 = vector.load %arg9[%c0_22, %c0_23] : memref<2x32xf32, #tpu.memory_space<vmem>>, vector<2x32xf32>
      %c0_24 = arith.constant 0 : index
      %c0_25 = arith.constant 0 : index
      %20 = vector.load %arg5[%c0_24, %c0_25] : memref<32x7xf32, #tpu.memory_space<vmem>>, vector<32x7xf32>
      %cst_26 = arith.constant dense<0.000000e+00> : vector<2x7xf32>
      %21 = tpu.matmul %19, %20, %cst_26 {dimension_numbers = #tpu.dot_dimension_numbers<[1], [0], [0], [1], [0, 0, 1, 1], [], []>} : vector<2x32xf32>, vector<32x7xf32>, vector<2x7xf32> -> vector<2x7xf32>
      %22 = arith.addf %18, %21 : vector<2x7xf32>
      %c0_27 = arith.constant 0 : index
      %c0_28 = arith.constant 0 : index
      %23 = vector.load %arg6[%c0_27, %c0_28] : memref<1x7xf32, #tpu.memory_space<vmem>>, vector<1x7xf32>
      %24 = vector.broadcast %23 : vector<1x7xf32> to vector<2x7xf32>
      %25 = arith.addf %22, %24 : vector<2x7xf32>
      %c0_29 = arith.constant 0 : index
      %c0_30 = arith.constant 0 : index
      %26 = vector.load %arg7[%c0_29, %c0_30] : memref<2x7xf32, #tpu.memory_space<vmem>>, vector<2x7xf32>
      tpu.vector_store %arg7[%c0_29, %c0_30], %25 {strides = array<i32>} : memref<2x7xf32, #tpu.memory_space<vmem>>, vector<2x7xf32>,
    } else {
    }
    return
  }
  func.func @transform_0(%arg0: i32, %arg1: i32) -> (i32, i32, i32) {
    %c0_i32 = arith.constant 0 : i32
    %0 = arith.minsi %arg1, %c0_i32 : i32
    %c0_i32_0 = arith.constant 0 : i32
    %c0_i32_1 = arith.constant 0 : i32
    return %arg0, %0, %c0_i32_0 : i32, i32, i32
  }
  func.func @transform_1(%arg0: i32, %arg1: i32) -> (i32, i32, i32) {
    %c0_i32 = arith.constant 0 : i32
    %0 = arith.minsi %arg1, %c0_i32 : i32
    %c0_i32_0 = arith.constant 0 : i32
    %c0_i32_1 = arith.constant 0 : i32
    return %arg0, %0, %c0_i32_0 : i32, i32, i32
  }
  func.func @transform_2(%arg0: i32, %arg1: i32) -> (i32, i32) {
    %c0_i32 = arith.constant 0 : i32
    %c0_i32_0 = arith.constant 0 : i32
    %c0_i32_1 = arith.constant 0 : i32
    return %c0_i32, %c0_i32_0 : i32, i32
  }
  func.func @transform_3(%arg0: i32, %arg1: i32) -> (i32, i32) {
    %c0_i32 = arith.constant 0 : i32
    %c0_i32_0 = arith.constant 0 : i32
    %c0_i32_1 = arith.constant 0 : i32
    return %c0_i32, %c0_i32_0 : i32, i32
  }
  func.func @transform_4(%arg0: i32, %arg1: i32) -> (i32, i32) {
    %c0_i32 = arith.constant 0 : i32
    %c0_i32_0 = arith.constant 0 : i32
    %c0_i32_1 = arith.constant 0 : i32
    return %c0_i32, %c0_i32_0 : i32, i32
  }
  func.func @transform_5(%arg0: i32, %arg1: i32) -> (i32, i32) {
    %c0_i32 = arith.constant 0 : i32
    %c0_i32_0 = arith.constant 0 : i32
    return %arg0, %c0_i32 : i32, i32
  }
}

</mosaic_0001>

<llo_original>
// kernel: tpu_custom_call.1
$region0: #{tpu_custom_call.1}
  #allocation0 [shape = 'u32[]', space=smem, size = 0x4, offset = 0x4, fixed_abs, tag = 'smem constant byte address 0x4 - core index']
  #allocation1 [shape = 'u32[144,128]{1,0:T(1,128)}', space=vmem, size = 0x12000, scoped, tag = 'internal scratch']
  #allocation2 [shape = 'f32[2,32]{1,0:T(2,128)}', space=vmem, size = 0x400, scoped, tag = 'scratch operand']
  #allocation3 [shape = 'f32[2,32]{1,0:T(2,128)}', space=vmem, size = 0x400, scoped, tag = 'scratch operand']
  %s0 = inlined_call_operand.vmem [shape: f32[2,8,32], index: 0, kind: input, shape index: {}]
  %s1 = inlined_call_operand.vmem [shape: f32[2,16,32], index: 1, kind: input, shape index: {}]
  %s2 = inlined_call_operand.vmem [shape: f32[32,7], index: 2, kind: input, shape index: {}]
  %s3 = inlined_call_operand.vmem [shape: f32[32,7], index: 3, kind: input, shape index: {}]
  %s4 = inlined_call_operand.vmem [shape: f32[1,7], index: 4, kind: input, shape index: {}]
  %s5 = inlined_call_operand.hbm [shape: f32[2,7], index: 5, kind: output, shape index: {}]
  %s6 = sld [smem:[#allocation0]]
  $region38: #{tpu_custom_call.1} parent=0
    _
  %s8 = ssub.s32 1, %s6
  %s9 = scalar_select 0, %s8, %s6
  $region1: #{tpu_custom_call.1} parent=0
    #allocation4 [shape = 'u8[1024]{0}', space=vmem, size = 0x400, scoped, tag = 'output window, operand 0, single buffered']
    #allocation5 [shape = 's32[1]{0}', space=sflag, size = 0x4, scoped, tag = 'scoped memory for tpu_custom_call.1']
    %10 = vsyncpa [#allocation5], 0
    // Predicated region
    $region2: #{tpu_custom_call.1} parent=1 // pred_check
      _
    $region3: #{tpu_custom_call.1} parent=1 // pred_check_branch
      %12 = sbr.rel (0) target = $region5
    $region4: #{tpu_custom_call.1} parent=1 // pred_region
      _
    $region5: #{tpu_custom_call.1} parent=1 // pred_fallthru
      _
    // Predicated region
    $region6: #{tpu_custom_call.1} parent=1 // pred_check
      _
    $region7: #{tpu_custom_call.1} parent=1 // pred_check_branch
      %14 = sbr.rel (0) target = $region9
    $region8: #{tpu_custom_call.1} parent=1 // pred_region
      _
    $region9: #{tpu_custom_call.1} parent=1 // pred_fallthru
      _
    // Predicated region
    $region10: #{tpu_custom_call.1} parent=1 // pred_check
      _
    $region11: #{tpu_custom_call.1} parent=1 // pred_check_branch
      %16 = sbr.rel (0) target = $region13
    $region12: #{tpu_custom_call.1} parent=1 // pred_region
      _
    $region13: #{tpu_custom_call.1} parent=1 // pred_fallthru
      _
    // Predicated region
    $region14: #{tpu_custom_call.1} parent=1 // pred_check
      _
    $region15: #{tpu_custom_call.1} parent=1 // pred_check_branch
      %18 = sbr.rel (0) target = $region17
    $region16: #{tpu_custom_call.1} parent=1 // pred_region
      _
    $region17: #{tpu_custom_call.1} parent=1 // pred_fallthru
      _
    // Predicated region
    $region18: #{tpu_custom_call.1} parent=1 // pred_check
      _
    $region19: #{tpu_custom_call.1} parent=1 // pred_check_branch
      %20 = sbr.rel (0) target = $region21
    $region20: #{tpu_custom_call.1} parent=1 // pred_region
      _
    $region21: #{tpu_custom_call.1} parent=1 // pred_fallthru
      _
    %p21 = scmp.eq.s32.totalorder 0, 0
    // Predicated region
    $region22: #{tpu_custom_call.1} parent=1 // pred_check
      %p22 = pneg %p21
    $region23: #{tpu_custom_call.1} parent=1 // pred_check_branch
      %24 = sbr.rel (%p22) target = $region25
    $region24: #{tpu_custom_call.1} parent=1 // pred_region
      %vm25 = vcmask 254976
      %26 = vst.msk [vmem:[#allocation2] sm:$0x3] %vm25, 0.0
      %27 = vst.msk [vmem:[#allocation3] sm:$0x3] %vm25, 0.0
    $region25: #{tpu_custom_call.1} parent=1 // pred_fallthru
      _
    %v28 = vld [vmem:[%s0] sm:$0xff]
    %v29 = vld [vmem:[%s0 + $0x8] sm:$0xff]
    %v30 = vld [vmem:[#allocation2] sm:$0x3]
    %vm31 = vcmask 261120
    %v32 = vsel %vm31, %v28, 0.0
    %v33 = vrot.slane %v32, 4
    %v34 = vadd.f32 %v32, %v33
    %v35 = vrot.slane %v34, 2
    %v36 = vadd.f32 %v34, %v35
    %v37 = vrot.slane %v36, 1
    %v38 = vadd.f32 %v36, %v37
    %v39 = vsel %vm31, %v29, 0.0
    %v40 = vrot.slane %v39, 4
    %v41 = vadd.f32 %v39, %v40
    %v42 = vrot.slane %v41, 2
    %v43 = vadd.f32 %v41, %v42
    %v44 = vrot.slane %v43, 1
    %v45 = vadd.f32 %v43, %v44
    %vm48 = vcmask 1041409
    %v49 = vsel %vm48, %v45, %v38
    %v51 = vadd.f32 %v30, %v49
    %vm52 = vcmask 254976
    %53 = vst.msk [vmem:[#allocation2] sm:$0x3] %vm52, %v51
    %v54 = vld [vmem:[%s1] sm:$0xff]
    %v55 = vld [vmem:[%s1 + $0x8] sm:$0xff]
    %v56 = vld [vmem:[%s1 + $0x10] sm:$0xff]
    %v57 = vld [vmem:[%s1 + $0x18] sm:$0xff]
    %v58 = vld [vmem:[#allocation3] sm:$0x3]
    %v59 = vsel %vm31, %v54, 0.0
    %v60 = vsel %vm31, %v55, 0.0
    %v61 = vadd.f32 %v59, %v60
    %v62 = vrot.slane %v61, 4
    %v63 = vadd.f32 %v61, %v62
    %v64 = vrot.slane %v63, 2
    %v65 = vadd.f32 %v63, %v64
    %v66 = vrot.slane %v65, 1
    %v67 = vadd.f32 %v65, %v66
    %v68 = vsel %vm31, %v56, 0.0
    %v69 = vsel %vm31, %v57, 0.0
    %v70 = vadd.f32 %v68, %v69
    %v71 = vrot.slane %v70, 4
    %v72 = vadd.f32 %v70, %v71
    %v73 = vrot.slane %v72, 2
    %v74 = vadd.f32 %v72, %v73
    %v75 = vrot.slane %v74, 1
    %v76 = vadd.f32 %v74, %v75
    %v79 = vsel %vm48, %v76, %v67
    %v81 = vadd.f32 %v58, %v79
    %82 = vst.msk [vmem:[#allocation3] sm:$0x3] %vm52, %v81
    // Predicated region
    $region26: #{tpu_custom_call.1} parent=1 // pred_check
      %p83 = pneg %p21
    $region27: #{tpu_custom_call.1} parent=1 // pred_check_branch
      %85 = sbr.rel (%p83) target = $region29
    $region28: #{tpu_custom_call.1} parent=1 // pred_region
      %v86 = vld [vmem:[#allocation2] sm:$0x3]
      %v87 = vld [vmem:[%s2] sm:$0xff]
      %v88 = vld [vmem:[%s2 + $0x8] sm:$0xff]
      %v89 = vld [vmem:[%s2 + $0x10] sm:$0xff]
      %v90 = vld [vmem:[%s2 + $0x18] sm:$0xff]
      %v91 = vld [vmem:[#allocation3] sm:$0x3]
      %v92 = vld [vmem:[%s3] sm:$0xff]
      %v93 = vld [vmem:[%s3 + $0x8] sm:$0xff]
      %v94 = vld [vmem:[%s3 + $0x10] sm:$0xff]
      %v95 = vld [vmem:[%s3 + $0x18] sm:$0xff]
      %v97 = vsel %vm31, %v91, 0
      %99 = vmatprep.subr.mxu0 0.0
      %100 = vmatpush1.msra.mxu0 %v92
      %101 = vmatprep.subr.mxu0 0.0
      %102 = vmatpush1.msra.mxu0 %v93
      %103 = vmatprep.subr.mxu0 0.0
      %104 = vmatpush1.msra.mxu0 %v94
      %105 = vmatprep.subr.mxu0 0.0
      %106 = vmatpush1.msra.mxu0 %v95
      %107 = vmatprep.subr.mxu0 0.0
      %108 = vmatpush1.msra.mxu0 0.0
      %109 = vmatprep.subr.mxu0 0.0
      %110 = vmatpush1.msra.mxu0 0.0
      %111 = vmatprep.subr.mxu0 0.0
      %112 = vmatpush1.msra.mxu0 0.0
      %113 = vmatprep.subr.mxu0 0.0
      %114 = vmatpush1.msra.mxu0 0.0
      %115 = vmatprep.subr.mxu0 0.0
      %116 = vmatpush1.msra.mxu0 0.0
      %117 = vmatprep.subr.mxu0 0.0
      %118 = vmatpush1.msra.mxu0 0.0
      %119 = vmatprep.subr.mxu0 0.0
      %120 = vmatpush1.msra.mxu0 0.0
      %121 = vmatprep.subr.mxu0 0.0
      %122 = vmatpush1.msra.mxu0 0.0
      %123 = vmatprep.subr.mxu0 0.0
      %124 = vmatpush1.msra.mxu0 0.0
      %125 = vmatprep.subr.mxu0 0.0
      %126 = vmatpush1.msra.mxu0 0.0
      %127 = vmatprep.subr.mxu0 0.0
      %128 = vmatpush1.msra.mxu0 0.0
      %129 = vmatprep.subr.mxu0 0.0
      %130 = vmatpush1.msra.mxu0 0.0
      %131 = vmatprep.subr.mxu0 0.0
      %132 = vmatpush1.msra.mxu0 0.0
      %133 = vmatprep.subr.mxu0 0.0
      %134 = vmatpush1.msra.mxu0 0.0
      %135 = vmatprep.subr.mxu0 0.0
      %136 = vmatpush1.msra.mxu0 0.0
      %137 = vmatprep.subr.mxu0 0.0
      %138 = vmatpush1.msra.mxu0 0.0
      %139 = vmatprep.subr.mxu0 0.0
      %140 = vmatpush1.msra.mxu0 0.0
      %141 = vmatprep.subr.mxu0 0.0
      %142 = vmatpush1.msra.mxu0 0.0
      %143 = vmatprep.subr.mxu0 0.0
      %144 = vmatpush1.msra.mxu0 0.0
      %145 = vmatprep.subr.mxu0 0.0
      %146 = vmatpush1.msra.mxu0 0.0
      %147 = vmatprep.subr.mxu0 0.0
      %148 = vmatpush1.msra.mxu0 0.0
      %149 = vmatprep.subr.mxu0 0.0
      %150 = vmatpush1.msra.mxu0 0.0
      %151 = vmatprep.subr.mxu0 0.0
      %152 = vmatpush1.msra.mxu0 0.0
      %153 = vmatprep.subr.mxu0 0.0
      %154 = vmatpush1.msra.mxu0 0.0
      %155 = vmatprep.subr.mxu0 0.0
      %156 = vmatpush1.msra.mxu0 0.0
      %157 = vmatprep.subr.mxu0 0.0
      %158 = vmatpush1.msra.mxu0 0.0
      %159 = vmatprep.subr.mxu0 0.0
      %160 = vmatpush1.msra.mxu0 0.0
      %161 = vmatprep.subr.mxu0 0.0
      %162 = vmatpush1.msra.mxu0 0.0
      %163 = vmatprep.mubr.f32.mxu0 0.0
      %164 = vmatmul.mubr.f32.gmra.mrb[0].mxu0 %v97
      %v165 = vpop.f32.mrb[0].mxu0
      %v166 = vadd.f32 0.0, %v165
      %v167 = vpop.f32.mrb[0].mxu0
      %168 = vdwg.mxu0
      %v170 = vsel %vm31, %v86, 0
      %172 = vmatprep.subr.mxu0 0.0
      %173 = vmatpush1.msra.mxu0 %v87
      %174 = vmatprep.subr.mxu0 0.0
      %175 = vmatpush1.msra.mxu0 %v88
      %176 = vmatprep.subr.mxu0 0.0
      %177 = vmatpush1.msra.mxu0 %v89
      %178 = vmatprep.subr.mxu0 0.0
      %179 = vmatpush1.msra.mxu0 %v90
      %180 = vmatprep.subr.mxu0 0.0
      %181 = vmatpush1.msra.mxu0 0.0
      %182 = vmatprep.subr.mxu0 0.0
      %183 = vmatpush1.msra.mxu0 0.0
      %184 = vmatprep.subr.mxu0 0.0
      %185 = vmatpush1.msra.mxu0 0.0
      %186 = vmatprep.subr.mxu0 0.0
      %187 = vmatpush1.msra.mxu0 0.0
      %188 = vmatprep.subr.mxu0 0.0
      %189 = vmatpush1.msra.mxu0 0.0
      %190 = vmatprep.subr.mxu0 0.0
      %191 = vmatpush1.msra.mxu0 0.0
      %192 = vmatprep.subr.mxu0 0.0
      %193 = vmatpush1.msra.mxu0 0.0
      %194 = vmatprep.subr.mxu0 0.0
      %195 = vmatpush1.msra.mxu0 0.0
      %196 = vmatprep.subr.mxu0 0.0
      %197 = vmatpush1.msra.mxu0 0.0
      %198 = vmatprep.subr.mxu0 0.0
      %199 = vmatpush1.msra.mxu0 0.0
      %200 = vmatprep.subr.mxu0 0.0
      %201 = vmatpush1.msra.mxu0 0.0
      %202 = vmatprep.subr.mxu0 0.0
      %203 = vmatpush1.msra.mxu0 0.0
      %204 = vmatprep.subr.mxu0 0.0
      %205 = vmatpush1.msra.mxu0 0.0
      %206 = vmatprep.subr.mxu0 0.0
      %207 = vmatpush1.msra.mxu0 0.0
      %208 = vmatprep.subr.mxu0 0.0
      %209 = vmatpush1.msra.mxu0 0.0
      %210 = vmatprep.subr.mxu0 0.0
      %211 = vmatpush1.msra.mxu0 0.0
      %212 = vmatprep.subr.mxu0 0.0
      %213 = vmatpush1.msra.mxu0 0.0
      %214 = vmatprep.subr.mxu0 0.0
      %215 = vmatpush1.msra.mxu0 0.0
      %216 = vmatprep.subr.mxu0 0.0
      %217 = vmatpush1.msra.mxu0 0.0
      %218 = vmatprep.subr.mxu0 0.0
      %219 = vmatpush1.msra.mxu0 0.0
      %220 = vmatprep.subr.mxu0 0.0
      %221 = vmatpush1.msra.mxu0 0.0
      %222 = vmatprep.subr.mxu0 0.0
      %223 = vmatpush1.msra.mxu0 0.0
      %224 = vmatprep.subr.mxu0 0.0
      %225 = vmatpush1.msra.mxu0 0.0
      %226 = vmatprep.subr.mxu0 0.0
      %227 = vmatpush1.msra.mxu0 0.0
      %228 = vmatprep.subr.mxu0 0.0
      %229 = vmatpush1.msra.mxu0 0.0
      %230 = vmatprep.subr.mxu0 0.0
      %231 = vmatpush1.msra.mxu0 0.0
      %232 = vmatprep.subr.mxu0 0.0
      %233 = vmatpush1.msra.mxu0 0.0
      %234 = vmatprep.subr.mxu0 0.0
      %235 = vmatpush1.msra.mxu0 0.0
      %236 = vmatprep.mubr.f32.mxu0 0.0
      %237 = vmatmul.mubr.f32.gmra.mrb[0].mxu0 %v170
      %v238 = vpop.f32.mrb[0].mxu0
      %v239 = vadd.f32 %v166, %v238
      %v240 = vpop.f32.mrb[0].mxu0
      %241 = vdwg.mxu0
      %v242 = vld [vmem:[%s4] sm:$0x1]
      %v244 = vlaneseq
      %v245 = vshrl.u32 %v244, 7
      %v246 = vsub.s32 0, %v245
      %v247 = vrot.slane %v242, %v246
      %v249 = vadd.f32 %v239, %v247
      %vm250 = vcmask 50176
      %251 = vst.msk [vmem:[#allocation4] sm:$0x3] %vm250, %v249
    $region29: #{tpu_custom_call.1} parent=1 // pred_fallthru
      _
    // Predicated region
    $region30: #{tpu_custom_call.1} parent=1 // pred_check
      _
    $region31: #{tpu_custom_call.1} parent=1 // pred_check_branch
      %253 = sbr.rel (0) target = $region33
    $region32: #{tpu_custom_call.1} parent=1 // pred_region
      %s255 = ssub.s32 32, 32
      %256 = vsyncadd [#allocation5], %s255
      %s258 = sshll.u32 [#allocation4], 4
      %s259 = int_to_ptr.vmem [resolvable:$true] %s258
      %261 = dma.vmem_to_hbm [thread:$0]  %s259, 32, %s5, [#allocation5]
    $region33: #{tpu_custom_call.1} parent=1 // pred_fallthru
      _
    // Predicated region
    $region34: #{tpu_custom_call.1} parent=1 // pred_check
      _
    $region35: #{tpu_custom_call.1} parent=1 // pred_check_branch
      %263 = sbr.rel (0) target = $region37
    $region36: #{tpu_custom_call.1} parent=1 // pred_region
      %264 = dma.done [#allocation5], 32
    $region37: #{tpu_custom_call.1} parent=1 // pred_fallthru
      _
    %265 = vsyncpa [#allocation5], 1

</llo_original>
